<compile_context>
chip_gen: v7x
topology: tpu7x:2x2x1
jax: 0.10.0
libtpu: 0.0.40
codegen_flags: <defaults>
</compile_context>

<pallas_src>
import functools
import math

import numpy as np

import jax
import jax.numpy as jnp
from jax import lax
from jax.experimental import pallas as pl
from jax.experimental.pallas import tpu as pltpu


# --------------------------------------------------------------------------
# Small helpers
# --------------------------------------------------------------------------
def _device_kind() -> str:
    try:
        return jax.devices()[0].device_kind.lower()
    except Exception:
        return ""


def _largest_divisor_leq(n: int, cap: int) -> int:
    cap = max(1, min(n, cap))
    for d in range(cap, 0, -1):
        if n % d == 0:
            return d
    return 1


@functools.lru_cache(maxsize=None)
def _softplus_poly_coeffs(deg: int = 6):
    """Near-minimax polynomial for log(1 + exp(-x)) on [0, 1] (|err| ~ 1e-6)."""
    n = 512
    x = 0.5 - 0.5 * np.cos((np.arange(n) + 0.5) * np.pi / n)   # Chebyshev nodes
    y = np.log1p(np.exp(-x))
    c = np.polynomial.polynomial.polyfit(x, y, deg)
    return tuple(float(v) for v in c)                          # low degree first


# --------------------------------------------------------------------------
# One-time probe: pltpu.roll rotation direction (cached per device kind).
# --------------------------------------------------------------------------
def _roll_probe_kernel(x_ref, o_ref):
    o_ref[...] = pltpu.roll(x_ref[...], 1, axis=1)


@functools.lru_cache(maxsize=None)
def _roll_matches_jnp(device_kind: str) -> bool:
    """True iff pltpu.roll(x, s, axis) == jnp.roll(x, s, axis) on this backend."""
    del device_kind  # part of the cache key only (review correctness concern)
    x = lax.broadcasted_iota(jnp.int32, (8, 128), 1)
    out = pl.pallas_call(
        _roll_probe_kernel,
        out_shape=jax.ShapeDtypeStruct((8, 128), jnp.int32),
    )(x)
    # jnp.roll convention wraps lane 127 into lane 0.
    return int(jax.device_get(out)[0, 0]) == 127


# --------------------------------------------------------------------------
# Kernel
# --------------------------------------------------------------------------
def _edge_loss_kernel(yp_ref, yt_ref, out_ref, acc_ref, *,
                      W, P, Hp, Wp, blk_rows, steps, valid_rows, mask_tail,
                      rolls, use_poly, poly_coeffs):
    c = pl.program_id(0)        # core / batch-split index ("parallel")
    i = pl.program_id(1)        # block index within this core ("arbitrary")

    @pl.when(i == 0)
    def _init():
        acc_ref[...] = jnp.zeros_like(acc_ref)

    r_l_prev, r_l_next, r_lw_prev, r_lw_next, r_s_prev, r_s_next = rolls
    need_vert = (P * Hp) > 1            # H > 1

    # ---- boundary masks: built once per step, shared by both edge() calls ----
    col = lax.broadcasted_iota(jnp.int32, (blk_rows, Wp), 1)
    if P > 1:
        if (W & (W - 1)) == 0:
            col_in = col & (W - 1)      # power-of-two fast path, 1 VPU op
        else:
            col_in = col % W            # rare fallback (hoisted: once per step)
        edge_l = col_in == 0
        edge_r = col_in == W - 1
        is_p0 = col < W                 # first packed row segment
        is_pl = col >= (Wp - W)         # last packed row segment
    else:
        edge_l = col == 0
        edge_r = col == W - 1
        is_p0 = is_pl = None

    top_img = bot_img = None
    if need_vert:
        if Hp > 1:
            row = lax.broadcasted_iota(jnp.int32, (blk_rows, Wp), 0)
            if blk_rows == Hp:
                rim = row
            elif (Hp & (Hp - 1)) == 0:
                rim = row & (Hp - 1)
            else:
                rim = row % Hp          # rare fallback (hoisted: once per step)
            top = rim == 0
            bot = rim == Hp - 1
            if P > 1:
                top_img = jnp.logical_and(top, is_p0)
                bot_img = jnp.logical_and(bot, is_pl)
            else:
                top_img, bot_img = top, bot
        else:                           # Hp == 1, P > 1: one packed row / image
            top_img, bot_img = is_p0, is_pl

    def edge(x):
        # horizontal 1-D window with zero padding at image column edges
        left = jnp.where(edge_l, 0.0, pltpu.roll(x, r_l_prev, axis=1))
        right = jnp.where(edge_r, 0.0, pltpu.roll(x, r_l_next, axis=1))
        hsum = x + left + right
        if need_vert:
            if P > 1:
                ua = pltpu.roll(hsum, r_lw_prev, axis=1)
                da = pltpu.roll(hsum, r_lw_next, axis=1)
                if Hp > 1:
                    up = jnp.where(is_p0, pltpu.roll(ua, r_s_prev, axis=0), ua)
                    dn = jnp.where(is_pl, pltpu.roll(da, r_s_next, axis=0), da)
                else:
                    up, dn = ua, da
            else:
                up = pltpu.roll(hsum, r_s_prev, axis=0)
                dn = pltpu.roll(hsum, r_s_next, axis=0)
            # Keep these as TRUE selects: besides the zero padding they also
            # discard wrap-around garbage pulled from out-of-range tail rows.
            up = jnp.where(top_img, 0.0, up)
            dn = jnp.where(bot_img, 0.0, dn)
            win = hsum + up + dn
        else:
            win = hsum
        # conv2d(x, [[-1,-1,-1],[-1,8,-1],[-1,-1,-1]], padding=1) == 9*x - win
        return jnp.abs(jnp.tanh(9.0 * x - win))

    p_edge = edge(yp_ref[...].astype(jnp.float32))   # logits
    t_edge = edge(yt_ref[...].astype(jnp.float32))   # labels

    if use_poly:
        # softplus(-p) via a near-minimax polynomial (valid: p = |tanh| in [0,1]);
        # saves 2 of 4 EUP transcendentals per element (targeted at v7x).
        sp = jnp.float32(poly_coeffs[-1]) * p_edge + jnp.float32(poly_coeffs[-2])
        for coef in reversed(poly_coeffs[:-2]):
            sp = sp * p_edge + jnp.float32(coef)
    else:
        sp = jnp.log(1.0 + jnp.exp(-p_edge))
    contrib = (1.0 - t_edge) * p_edge + sp

    if not mask_tail:
        acc_ref[...] = acc_ref[...] + contrib
    else:
        base_row = (c * steps + i) * blk_rows
        in_bounds = (base_row + blk_rows) <= valid_rows

        @pl.when(in_bounds)                       # interior blocks: no masking
        def _full():
            acc_ref[...] = acc_ref[...] + contrib

        @pl.when(jnp.logical_not(in_bounds))      # tail / duplicate blocks only
        def _tail():
            g_row = base_row + lax.broadcasted_iota(jnp.int32, (blk_rows, Wp), 0)
            acc_ref[...] = acc_ref[...] + jnp.where(g_row < valid_rows,
                                                    contrib, 0.0)

    # fold the reduction into the kernel: only (blk_rows, 1) partials go to HBM
    @pl.when(i == steps - 1)
    def _fin():
        out_ref[...] = jnp.sum(acc_ref[...], axis=1, keepdims=True)


# --------------------------------------------------------------------------
# Wrapper
# --------------------------------------------------------------------------
def edge_loss(y_pred, y_true, *, block_elems=512 * 1024, use_poly=None):
    """Pallas implementation of EdgeLoss.forward(y_pred, y_true)."""
    N, C, H, W = y_pred.shape
    assert y_true.shape == y_pred.shape
    assert C == 1, "Laplace filter is single-channel (weight shape [1,1,3,3])"
    B = N * C

    kind = _device_kind()
    two_tc = "v7" in kind                     # 2 TensorCores per chip (v7x)
    if use_poly is None:
        use_poly = two_tc
    poly_coeffs = _softplus_poly_coeffs() if use_poly else None

    # Lane packing: P consecutive image rows per 128-lane register row.
    # (B*H, W) -> (B*H/P, P*W) is a contiguous (free) reshape.
    P = _largest_divisor_leq(H, max(1, 128 // W))
    Hp, Wp = H // P, W * P
    rows_total = B * Hp

    yp = y_pred.reshape(rows_total, Wp)
    yt = y_true.reshape(rows_total, Wp)

    it_p = jnp.dtype(y_pred.dtype).itemsize
    it_t = jnp.dtype(y_true.dtype).itemsize
    packing = max(1, 4 // min(it_p, it_t))
    sub_mult = 8 * packing                                    # sublane tile
    unit_rows = Hp * sub_mult // math.gcd(Hp, sub_mult)       # lcm(Hp, sub_mult)

    target_rows = max(unit_rows,
                      (max(1, block_elems // Wp) // unit_rows) * unit_rows)
    if two_tc and rows_total > unit_rows:
        # keep >= 2 blocks so both TensorCores get real work on v7x
        half = -(-((rows_total + 1) // 2) // unit_rows) * unit_rows
        target_rows = min(target_rows, half)

    pad_rows = 0
    if target_rows >= rows_total:
        # Single block over everything; pad a few zero rows for sublane
        # alignment (their contributions are masked out in the kernel).
        # TODO(synk): very large single images would rather be H-tiled with a
        # 1-row halo than padded here.
        blk_rows = -(-rows_total // sub_mult) * sub_mult
        pad_rows = blk_rows - rows_total
        if pad_rows:
            yp = jnp.pad(yp, ((0, pad_rows), (0, 0)))
            yt = jnp.pad(yt, ((0, pad_rows), (0, 0)))
        nblocks, ncores, steps = 1, 1, 1
    else:
        blk_rows = target_rows
        nblocks = -(-rows_total // blk_rows)
        ncores = 2 if (two_tc and nblocks >= 2) else 1
        steps = -(-nblocks // ncores)
    mask_tail = (ncores * steps * blk_rows) != rows_total

    # pltpu.roll direction calibration.
    if _roll_matches_jnp(kind):
        def _prev(n, k=1): return k % n
        def _next(n, k=1): return (n - k) % n
    else:
        def _prev(n, k=1): return (n - k) % n
        def _next(n, k=1): return k % n
    rolls = (_prev(Wp), _next(Wp), _prev(Wp, W), _next(Wp, W),
             _prev(blk_rows), _next(blk_rows))

    kernel = functools.partial(
        _edge_loss_kernel, W=W, P=P, Hp=Hp, Wp=Wp, blk_rows=blk_rows,
        steps=steps, valid_rows=rows_total, mask_tail=mask_tail,
        rolls=rolls, use_poly=use_poly, poly_coeffs=poly_coeffs)

    def in_idx(c, i):
        # Over-provisioned (core, step) pairs re-read a valid block; their
        # contributions are masked out in the kernel.
        return (jnp.minimum(c * steps + i, nblocks - 1), 0)

    elems = B * H * W
    itemsize = max(it_p, it_t)
    cost = pl.CostEstimate(
        flops=50 * elems,
        transcendentals=(2 if use_poly else 4) * elems,
        bytes_accessed=2 * elems * itemsize + ncores * blk_rows * 4)

    # Footprint/device-aware VMEM limit (v7x has only 64 MiB physical VMEM).
    blk_in_bytes = blk_rows * Wp * (it_p + it_t)      # one buffer of each input
    footprint = 2 * blk_in_bytes + blk_rows * Wp * 4 + (1 << 20)
    try:
        vmem_cap = int(pltpu.get_tpu_info().vmem_capacity_bytes)
    except Exception:
        vmem_cap = (64 << 20) if two_tc else (128 << 20)
    vmem_limit = max(32 << 20, footprint + (8 << 20))
    vmem_limit = min(vmem_limit, max(vmem_cap * 3 // 4, footprint + (4 << 20)))

    partials = pl.pallas_call(
        kernel,
        out_shape=jax.ShapeDtypeStruct((ncores, blk_rows, 1), jnp.float32),
        grid_spec=pltpu.PrefetchScalarGridSpec(
            num_scalar_prefetch=0,
            grid=(ncores, steps),
            in_specs=[
                pl.BlockSpec((blk_rows, Wp), in_idx),
                pl.BlockSpec((blk_rows, Wp), in_idx),
            ],
            out_specs=pl.BlockSpec((None, blk_rows, 1), lambda c, i: (c, 0, 0)),
            scratch_shapes=[pltpu.VMEM((blk_rows, Wp), jnp.float32)],
        ),
        compiler_params=pltpu.CompilerParams(
            dimension_semantics=("parallel", "arbitrary"),
            vmem_limit_bytes=int(vmem_limit),
        ),
        cost_estimate=cost,
    )(yp, yt)

    return jnp.sum(partials) / float(elems)


# ----------------------- pure-JAX reference (for sanity) -----------------------
def _edge_loss_ref(y_pred, y_true):
    laplace = jnp.array([[-1., -1., -1.],
                         [-1., 8., -1.],
                         [-1., -1., -1.]], jnp.float32).reshape(1, 1, 3, 3)

    def torch_laplace(x):
        e = lax.conv_general_dilated(
            x.astype(jnp.float32), laplace,
            window_strides=(1, 1), padding=((1, 1), (1, 1)),
            dimension_numbers=("NCHW", "OIHW", "NCHW"))
        return jnp.abs(jnp.tanh(e))

    t = torch_laplace(y_true)
    p = torch_laplace(y_pred)
    return jnp.mean((1.0 - t) * p + jnp.log(1.0 + jnp.exp(-p)))


if __name__ == "__main__":
    key = jax.random.PRNGKey(0)

    def make(k, shape, dtype):
        k1, k2 = jax.random.split(k)
        y_pred = jax.random.normal(k1, shape, jnp.float32).astype(dtype)
        y_true = (jax.random.uniform(k2, shape, jnp.float32) > 0.5).astype(dtype)
        return y_pred, y_true

    cases = [
        ((2, 1, 16, 16), jnp.float32, {}),                      # W<128: 8-row lane packing + padded tail
        ((2, 1, 8, 128), jnp.float32, {}),                      # full 128-lane width (P == 1 path)
        ((10, 1, 16, 16), jnp.float32, {"block_elems": 1024}),  # multi-block + ragged tail
        ((8, 1, 16, 16), jnp.float32, {"block_elems": 1024}),   # multi-block, exact fit
        ((2, 1, 12, 24), jnp.float32, {}),                      # non-power-of-two W / Hp masks
        ((4, 1, 16, 16), jnp.bfloat16, {}),                     # bf16 inputs (16-row sublane tile)
        ((2, 1, 16, 16), jnp.float32, {"use_poly": True}),      # softplus polynomial path
    ]
    for idx, (shape, dtype, kw) in enumerate(cases):
        key, sub = jax.random.split(key)
        yp_in, yt_in = make(sub, shape, dtype)
        got = jax.block_until_ready(edge_loss(yp_in, yt_in, **kw))
        want = jax.block_until_ready(_edge_loss_ref(yp_in, yt_in))
        assert jnp.allclose(got, want, atol=1e-4, rtol=1e-4), (idx, shape, got, want)
    print("KERNEL_OK")
</pallas_src>

<mosaic_0001>
module attributes {stable_mosaic.version = 11 : i64} {
  func.func @_roll_probe_kernel(%arg0: memref<8x128xi32, #tpu.memory_space<vmem>>, %arg1: memref<8x128xi32, #tpu.memory_space<vmem>>) attributes {dimension_semantics = [], scalar_prefetch = 0 : i64, scratch_operands = 0 : i64, tpu.core_type = #tpu.core_type<tc>} {
    %c0 = arith.constant 0 : index
    %c0_0 = arith.constant 0 : index
    %0 = vector.load %arg0[%c0, %c0_0] : memref<8x128xi32, #tpu.memory_space<vmem>>, vector<8x128xi32>
    %c1_i32 = arith.constant 1 : i32
    %1 = tpu.dynamic_rotate %0 by %c1_i32 dim 1 : vector<8x128xi32>, i32 -> vector<8x128xi32>
    %c0_1 = arith.constant 0 : index
    %c0_2 = arith.constant 0 : index
    %2 = vector.load %arg1[%c0_1, %c0_2] : memref<8x128xi32, #tpu.memory_space<vmem>>, vector<8x128xi32>
    tpu.vector_store %arg1[%c0_1, %c0_2], %1 {strides = array<i32>} : memref<8x128xi32, #tpu.memory_space<vmem>>, vector<8x128xi32>,
    return
  }
}

</mosaic_0001>

<llo_original>
// kernel: tpu_custom_call.1
$region0: #{tpu_custom_call.1}
  #allocation0 [shape = 'u32[]', space=smem, size = 0x4, offset = 0x4, fixed_abs, tag = 'smem constant byte address 0x4 - core index']
  #allocation1 [shape = 'u32[144,128]{1,0:T(1,128)}', space=vmem, size = 0x12000, scoped, tag = 'internal scratch']
  %s0 = inlined_call_operand.hbm [shape: s32[8,128], index: 0, kind: input, shape index: {}]
  %s1 = inlined_call_operand.hbm [shape: s32[8,128], index: 1, kind: output, shape index: {}]
  %s2 = sld [smem:[#allocation0]]
  $region18: #{tpu_custom_call.1} parent=0
    _
  %s4 = ssub.s32 1, %s2
  %s5 = scalar_select 0, %s4, %s2
  $region1: #{tpu_custom_call.1} parent=0
    #allocation2 [shape = 'u8[4096]{0}', space=vmem, size = 0x1000, scoped, tag = 'input window, operand 0, single buffered']
    #allocation3 [shape = 's32[1]{0}', space=sflag, size = 0x4, scoped, tag = 'scoped memory for tpu_custom_call.1']
    #allocation4 [shape = 's32[1]{0}', space=sflag, size = 0x4, scoped, tag = 'scoped memory for tpu_custom_call.1']
    #allocation5 [shape = 'u8[4096]{0}', space=vmem, size = 0x1000, scoped, tag = 'output window, operand 0, single buffered']
    %6 = vsyncpa [#allocation3], 0
    %7 = vsyncpa [#allocation4], 0
    // Predicated region
    $region2: #{tpu_custom_call.1} parent=1 // pred_check
      _
    $region3: #{tpu_custom_call.1} parent=1 // pred_check_branch
      %9 = sbr.rel (0) target = $region5
    $region4: #{tpu_custom_call.1} parent=1 // pred_region
      %s11 = ssub.s32 128, 128
      %12 = vsyncadd [#allocation3], %s11
      %s14 = sshll.u32 [#allocation2], 4
      %s15 = int_to_ptr.vmem [resolvable:$true] %s14
      %17 = dma.hbm_to_vmem [thread:$0]  %s0, 128, %s15, [#allocation3]
    $region5: #{tpu_custom_call.1} parent=1 // pred_fallthru
      _
    // Predicated region
    $region6: #{tpu_custom_call.1} parent=1 // pred_check
      _
    $region7: #{tpu_custom_call.1} parent=1 // pred_check_branch
      %19 = sbr.rel (0) target = $region9
    $region8: #{tpu_custom_call.1} parent=1 // pred_region
      %20 = dma.done [#allocation3], 128
    $region9: #{tpu_custom_call.1} parent=1 // pred_fallthru
      _
    %v21 = vld [vmem:[#allocation2] sm:$0xff]
    %22 = vrot.lane.b32.xlu0 %v21, 1
    %v23 = vpop.permute.xlu0 %22
    %24 = vst [vmem:[#allocation5] sm:$0xff] %v23
    // Predicated region
    $region10: #{tpu_custom_call.1} parent=1 // pred_check
      _
    $region11: #{tpu_custom_call.1} parent=1 // pred_check_branch
      %26 = sbr.rel (0) target = $region13
    $region12: #{tpu_custom_call.1} parent=1 // pred_region
      %s28 = ssub.s32 128, 128
      %29 = vsyncadd [#allocation4], %s28
      %s31 = sshll.u32 [#allocation5], 4
      %s32 = int_to_ptr.vmem [resolvable:$true] %s31
      %34 = dma.vmem_to_hbm [thread:$0]  %s32, 128, %s1, [#allocation4]
    $region13: #{tpu_custom_call.1} parent=1 // pred_fallthru
      _
    // Predicated region
    $region14: #{tpu_custom_call.1} parent=1 // pred_check
      _
    $region15: #{tpu_custom_call.1} parent=1 // pred_check_branch
      %36 = sbr.rel (0) target = $region17
    $region16: #{tpu_custom_call.1} parent=1 // pred_region
      %37 = dma.done [#allocation4], 128
    $region17: #{tpu_custom_call.1} parent=1 // pred_fallthru
      _
    %38 = vsyncpa [#allocation3], 1
    %39 = vsyncpa [#allocation4], 1

</llo_original>
